<compile_context>
chip_gen: v7x
topology: tpu7x:2x2x1
jax: 0.10.0
libtpu: 0.0.40
codegen_flags: <defaults>
</compile_context>

<pallas_src>
import functools

import jax
import jax.numpy as jnp
from jax.experimental import pallas as pl
from jax.experimental.pallas import tpu as pltpu


LN_EPS = 1e-5


def _round_up(x: int, m: int) -> int:
    return ((x + m - 1) // m) * m


def _adaptive_prompter_kernel(
    x_ref,        # (TB, H)       input representation tile
    gamma_ref,    # (1, H)        layernorm scale  (input_norm)
    beta_ref,     # (1, H)        layernorm shift
    w1_ref,       # (H, N)        hidden Linear weight        (bf16 or f32)
    b1_ref,       # (1, N)        hidden Linear bias          (f32)
    w2p_ref,      # (N, Tpad)     folded weight  w2 @ P.T     (bf16 or f32)
    b2p_ref,      # (1, Tpad)     folded bias    b2 @ P.T     (f32)
    o_ref,        # (TB, Tpad)    output tile
    *,
    input_norm: bool,
):
    x = x_ref[...].astype(jnp.float32)

    # ---- MLP: optional input LayerNorm (f32 on VPU, rsqrt on EUP) ----------
    if input_norm:
        mu = jnp.mean(x, axis=-1, keepdims=True)
        var = jnp.mean((x - mu) * (x - mu), axis=-1, keepdims=True)
        x = (x - mu) * jax.lax.rsqrt(var + LN_EPS)
        x = x * gamma_ref[...] + beta_ref[...]

    # ---- MLP: hidden layer (Linear -> ReLU -> [Dropout=id]) ----------------
    h = jnp.dot(
        x.astype(w1_ref.dtype), w1_ref[...], preferred_element_type=jnp.float32
    )
    h = jnp.maximum(h + b1_ref[...], 0.0)

    # ---- Output layer fused with the prompt matmul:  h @ (w2 @ P.T) + b2@P.T
    out = jnp.dot(
        h.astype(w2p_ref.dtype), w2p_ref[...], preferred_element_type=jnp.float32
    )
    o_ref[...] = (out + b2p_ref[...]).astype(o_ref.dtype)


def adaptive_prompter_forward(
    representation,
    params,
    *,
    input_norm: bool = True,
    use_bf16: bool = True,
    block_b: int = 256,
):
    """Fused AdaptivePrompter.forward on TPU via Pallas.

    representation: (batch, hidden_dim) float32
    params: dict with gamma, beta, w1, b1, w2, b2, P
    returns: (batch, task_num) float32
    """
    batch, hidden_dim = representation.shape
    num_neurons = params["w1"].shape[1]
    task_num = params["P"].shape[0]

    # ---- Fold the prompt matmul into the output layer (wrapper-side) -------
    #   (h @ w2 + b2) @ P.T  ==  h @ (w2 @ P.T) + (b2 @ P.T)
    w2p = params["w2"] @ params["P"].T          # (N, T)
    b2p = params["b2"] @ params["P"].T          # (1, T)

    # ---- Lane-dense output: pad T up to a multiple of 128 -------------------
    t_pad = _round_up(task_num, 128)
    if t_pad != task_num:
        w2p = jnp.pad(w2p, ((0, 0), (0, t_pad - task_num)))
        b2p = jnp.pad(b2p, ((0, 0), (0, t_pad - task_num)))

    # ---- Matmul operands in bf16 (f32 accumulation inside the kernel) -------
    mm_dtype = jnp.bfloat16 if use_bf16 else jnp.float32
    w1 = params["w1"].astype(mm_dtype)
    w2p = w2p.astype(mm_dtype)
    b1 = params["b1"].astype(jnp.float32)
    b2p = b2p.astype(jnp.float32)
    gamma = params["gamma"].astype(jnp.float32)
    beta = params["beta"].astype(jnp.float32)

    # ---- Batch tiling (TB multiple of 8, pad trailing rows) ------------------
    tb = min(block_b, _round_up(batch, 8))
    tb = _round_up(tb, 8)
    b_pad = _round_up(batch, tb)
    x = representation.astype(jnp.float32)
    if b_pad != batch:
        x = jnp.pad(x, ((0, b_pad - batch), (0, 0)))
    grid = (b_pad // tb,)

    kernel = functools.partial(_adaptive_prompter_kernel, input_norm=input_norm)

    resident = lambda shape: pl.BlockSpec(shape, lambda i: (0, 0))

    out_padded = pl.pallas_call(
        kernel,
        out_shape=jax.ShapeDtypeStruct((b_pad, t_pad), jnp.float32),
        grid=grid,
        in_specs=[
            pl.BlockSpec((tb, hidden_dim), lambda i: (i, 0)),   # x tile
            resident((1, hidden_dim)),                          # gamma
            resident((1, hidden_dim)),                          # beta
            resident((hidden_dim, num_neurons)),                # w1
            resident((1, num_neurons)),                         # b1
            resident((num_neurons, t_pad)),                     # w2 @ P.T
            resident((1, t_pad)),                               # b2 @ P.T
        ],
        out_specs=pl.BlockSpec((tb, t_pad), lambda i: (i, 0)),
        compiler_params=pltpu.CompilerParams(
            dimension_semantics=("parallel",),
            vmem_limit_bytes=64 << 20,
        ),
    )(x, gamma, beta, w1, b1, w2p, b2p)

    return out_padded[:batch, :task_num]


def init_params(key, hidden_dim, num_neurons, task_num):
    """Deterministic synthetic parameter init mirroring the module __init__."""
    k_p, k_w1, k_w2 = jax.random.split(key, 3)

    # prompts: task_num parameters of shape (task_num,), N(0, 0.01).
    # With the identity mapper, construct_P stacks them -> P is (task_num, task_num).
    P = 0.01 * jax.random.normal(k_p, (task_num, task_num), dtype=jnp.float32)

    # MLP weights (Kaiming-ish scale, deterministic).
    w1 = jax.random.normal(k_w1, (hidden_dim, num_neurons), dtype=jnp.float32) * (
        (2.0 / hidden_dim) ** 0.5
    )
    b1 = jnp.zeros((1, num_neurons), dtype=jnp.float32)
    w2 = jax.random.normal(k_w2, (num_neurons, task_num), dtype=jnp.float32) * (
        (2.0 / num_neurons) ** 0.5
    )
    b2 = jnp.zeros((1, task_num), dtype=jnp.float32)

    gamma = jnp.ones((1, hidden_dim), dtype=jnp.float32)
    beta = jnp.zeros((1, hidden_dim), dtype=jnp.float32)

    return {
        "gamma": gamma, "beta": beta,
        "w1": w1, "b1": b1, "w2": w2, "b2": b2,
        "P": P,
    }


def reference_forward(representation, params, *, input_norm=True):
    """Pure-JAX f32 reference of the same forward pass."""
    x = representation.astype(jnp.float32)
    if input_norm:
        mu = jnp.mean(x, axis=-1, keepdims=True)
        var = jnp.mean((x - mu) ** 2, axis=-1, keepdims=True)
        x = (x - mu) / jnp.sqrt(var + LN_EPS)
        x = x * params["gamma"] + params["beta"]
    h = jnp.maximum(x @ params["w1"] + params["b1"], 0.0)
    logits = h @ params["w2"] + params["b2"]
    return logits @ params["P"].T


if __name__ == "__main__":
    # Small shapes consistent with the module's forward:
    #   representation: (batch, hidden_dim); output: (batch, task_num)
    batch, hidden_dim, num_neurons, task_num = 8, 32, 64, 4

    key = jax.random.PRNGKey(0)
    k_x, k_params = jax.random.split(key)

    representation = jax.random.normal(k_x, (batch, hidden_dim), dtype=jnp.float32)
    params = init_params(k_params, hidden_dim, num_neurons, task_num)

    ref = reference_forward(representation, params, input_norm=True)

    # f32 path: tight check of the fused/folded kernel math.
    out_f32 = adaptive_prompter_forward(
        representation, params, input_norm=True, use_bf16=False
    )
    out_f32 = jax.block_until_ready(out_f32)
    assert out_f32.shape == (batch, task_num)
    assert jnp.allclose(out_f32, ref, atol=1e-4, rtol=1e-4), "f32 mismatch vs reference"

    # bf16-MXU path (default): looser tolerance due to bf16 operand rounding.
    out = adaptive_prompter_forward(representation, params, input_norm=True)
    out = jax.block_until_ready(out)
    assert out.shape == (batch, task_num)
    assert jnp.allclose(out, ref, atol=2e-2, rtol=2e-2), "bf16 mismatch vs reference"

    print("KERNEL_OK")
</pallas_src>

<mosaic_0001>
module attributes {stable_mosaic.version = 11 : i64} {
  func.func @_adaptive_prompter_kernel(%arg0: i32, %arg1: memref<8x32xf32, #tpu.memory_space<vmem>>, %arg2: memref<1x32xf32, #tpu.memory_space<vmem>>, %arg3: memref<1x32xf32, #tpu.memory_space<vmem>>, %arg4: memref<32x64xf32, #tpu.memory_space<vmem>>, %arg5: memref<1x64xf32, #tpu.memory_space<vmem>>, %arg6: memref<64x128xf32, #tpu.memory_space<vmem>>, %arg7: memref<1x128xf32, #tpu.memory_space<vmem>>, %arg8: memref<8x128xf32, #tpu.memory_space<vmem>>) attributes {dimension_semantics = [#tpu.dimension_semantics<parallel>], iteration_bounds = array<i64: 1>, scalar_prefetch = 0 : i64, scratch_operands = 0 : i64, tpu.core_type = #tpu.core_type<tc>, window_params = [{transform_indices = @transform_0, window_bounds = array<i64: 8, 32>}, {pipeline_mode = #tpu.pipeline_mode<synchronous>, transform_indices = @transform_1, window_bounds = array<i64: 1, 32>}, {pipeline_mode = #tpu.pipeline_mode<synchronous>, transform_indices = @transform_2, window_bounds = array<i64: 1, 32>}, {pipeline_mode = #tpu.pipeline_mode<synchronous>, transform_indices = @transform_3, window_bounds = array<i64: 32, 64>}, {pipeline_mode = #tpu.pipeline_mode<synchronous>, transform_indices = @transform_4, window_bounds = array<i64: 1, 64>}, {pipeline_mode = #tpu.pipeline_mode<synchronous>, transform_indices = @transform_5, window_bounds = array<i64: 64, 128>}, {pipeline_mode = #tpu.pipeline_mode<synchronous>, transform_indices = @transform_6, window_bounds = array<i64: 1, 128>}, {transform_indices = @transform_7, window_bounds = array<i64: 8, 128>}]} {
    %c0 = arith.constant 0 : index
    %c0_0 = arith.constant 0 : index
    %0 = vector.load %arg1[%c0, %c0_0] : memref<8x32xf32, #tpu.memory_space<vmem>>, vector<8x32xf32>
    %cst = arith.constant dense<0.000000e+00> : vector<8xf32>
    %1 = vector.multi_reduction <add>, %0, %cst [1] : vector<8x32xf32> to vector<8xf32>
    %2 = vector.shape_cast %1 : vector<8xf32> to vector<8x1xf32>
    %cst_1 = arith.constant 3.200000e+01 : f32
    %3 = vector.broadcast %cst_1 : f32 to vector<8x1xf32>
    %4 = arith.divf %2, %3 : vector<8x1xf32>
    %5 = vector.broadcast %4 : vector<8x1xf32> to vector<8x32xf32>
    %6 = arith.subf %0, %5 : vector<8x32xf32>
    %7 = vector.broadcast %4 : vector<8x1xf32> to vector<8x32xf32>
    %8 = arith.subf %0, %7 : vector<8x32xf32>
    %9 = arith.mulf %6, %8 : vector<8x32xf32>
    %cst_2 = arith.constant dense<0.000000e+00> : vector<8xf32>
    %10 = vector.multi_reduction <add>, %9, %cst_2 [1] : vector<8x32xf32> to vector<8xf32>
    %11 = vector.shape_cast %10 : vector<8xf32> to vector<8x1xf32>
    %cst_3 = arith.constant 3.200000e+01 : f32
    %12 = vector.broadcast %cst_3 : f32 to vector<8x1xf32>
    %13 = arith.divf %11, %12 : vector<8x1xf32>
    %14 = vector.broadcast %4 : vector<8x1xf32> to vector<8x32xf32>
    %15 = arith.subf %0, %14 : vector<8x32xf32>
    %cst_4 = arith.constant 9.99999974E-6 : f32
    %16 = vector.broadcast %cst_4 : f32 to vector<8x1xf32>
    %17 = arith.addf %13, %16 : vector<8x1xf32>
    %18 = math.rsqrt %17 : vector<8x1xf32>
    %19 = vector.broadcast %18 : vector<8x1xf32> to vector<8x32xf32>
    %20 = arith.mulf %15, %19 : vector<8x32xf32>
    %c0_5 = arith.constant 0 : index
    %c0_6 = arith.constant 0 : index
    %21 = vector.load %arg2[%c0_5, %c0_6] : memref<1x32xf32, #tpu.memory_space<vmem>>, vector<1x32xf32>
    %22 = vector.broadcast %21 : vector<1x32xf32> to vector<8x32xf32>
    %23 = arith.mulf %20, %22 : vector<8x32xf32>
    %c0_7 = arith.constant 0 : index
    %c0_8 = arith.constant 0 : index
    %24 = vector.load %arg3[%c0_7, %c0_8] : memref<1x32xf32, #tpu.memory_space<vmem>>, vector<1x32xf32>
    %25 = vector.broadcast %24 : vector<1x32xf32> to vector<8x32xf32>
    %26 = arith.addf %23, %25 : vector<8x32xf32>
    %c0_9 = arith.constant 0 : index
    %c0_10 = arith.constant 0 : index
    %27 = vector.load %arg4[%c0_9, %c0_10] : memref<32x64xf32, #tpu.memory_space<vmem>>, vector<32x64xf32>
    %cst_11 = arith.constant dense<0.000000e+00> : vector<8x64xf32>
    %28 = tpu.matmul %26, %27, %cst_11 {dimension_numbers = #tpu.dot_dimension_numbers<[1], [0], [0], [1], [0, 0, 1, 1], [], []>} : vector<8x32xf32>, vector<32x64xf32>, vector<8x64xf32> -> vector<8x64xf32>
    %c0_12 = arith.constant 0 : index
    %c0_13 = arith.constant 0 : index
    %29 = vector.load %arg5[%c0_12, %c0_13] : memref<1x64xf32, #tpu.memory_space<vmem>>, vector<1x64xf32>
    %30 = vector.broadcast %29 : vector<1x64xf32> to vector<8x64xf32>
    %31 = arith.addf %28, %30 : vector<8x64xf32>
    %cst_14 = arith.constant 0.000000e+00 : f32
    %32 = vector.broadcast %cst_14 : f32 to vector<8x64xf32>
    %33 = arith.maximumf %31, %32 : vector<8x64xf32>
    %c0_15 = arith.constant 0 : index
    %c0_16 = arith.constant 0 : index
    %34 = vector.load %arg6[%c0_15, %c0_16] : memref<64x128xf32, #tpu.memory_space<vmem>>, vector<64x128xf32>
    %cst_17 = arith.constant dense<0.000000e+00> : vector<8x128xf32>
    %35 = tpu.matmul %33, %34, %cst_17 {dimension_numbers = #tpu.dot_dimension_numbers<[1], [0], [0], [1], [0, 0, 1, 1], [], []>} : vector<8x64xf32>, vector<64x128xf32>, vector<8x128xf32> -> vector<8x128xf32>
    %c0_18 = arith.constant 0 : index
    %c0_19 = arith.constant 0 : index
    %36 = vector.load %arg7[%c0_18, %c0_19] : memref<1x128xf32, #tpu.memory_space<vmem>>, vector<1x128xf32>
    %37 = vector.broadcast %36 : vector<1x128xf32> to vector<8x128xf32>
    %38 = arith.addf %35, %37 : vector<8x128xf32>
    %c0_20 = arith.constant 0 : index
    %c0_21 = arith.constant 0 : index
    %39 = vector.load %arg8[%c0_20, %c0_21] : memref<8x128xf32, #tpu.memory_space<vmem>>, vector<8x128xf32>
    tpu.vector_store %arg8[%c0_20, %c0_21], %38 {strides = array<i32>} : memref<8x128xf32, #tpu.memory_space<vmem>>, vector<8x128xf32>,
    return
  }
  func.func @transform_0(%arg0: i32) -> (i32, i32) {
    %c0_i32 = arith.constant 0 : i32
    %c0_i32_0 = arith.constant 0 : i32
    return %arg0, %c0_i32 : i32, i32
  }
  func.func @transform_1(%arg0: i32) -> (i32, i32) {
    %c0_i32 = arith.constant 0 : i32
    %c0_i32_0 = arith.constant 0 : i32
    %c0_i32_1 = arith.constant 0 : i32
    return %c0_i32, %c0_i32_0 : i32, i32
  }
  func.func @transform_2(%arg0: i32) -> (i32, i32) {
    %c0_i32 = arith.constant 0 : i32
    %c0_i32_0 = arith.constant 0 : i32
    %c0_i32_1 = arith.constant 0 : i32
    return %c0_i32, %c0_i32_0 : i32, i32
  }
  func.func @transform_3(%arg0: i32) -> (i32, i32) {
    %c0_i32 = arith.constant 0 : i32
    %c0_i32_0 = arith.constant 0 : i32
    %c0_i32_1 = arith.constant 0 : i32
    return %c0_i32, %c0_i32_0 : i32, i32
  }
  func.func @transform_4(%arg0: i32) -> (i32, i32) {
    %c0_i32 = arith.constant 0 : i32
    %c0_i32_0 = arith.constant 0 : i32
    %c0_i32_1 = arith.constant 0 : i32
    return %c0_i32, %c0_i32_0 : i32, i32
  }
  func.func @transform_5(%arg0: i32) -> (i32, i32) {
    %c0_i32 = arith.constant 0 : i32
    %c0_i32_0 = arith.constant 0 : i32
    %c0_i32_1 = arith.constant 0 : i32
    return %c0_i32, %c0_i32_0 : i32, i32
  }
  func.func @transform_6(%arg0: i32) -> (i32, i32) {
    %c0_i32 = arith.constant 0 : i32
    %c0_i32_0 = arith.constant 0 : i32
    %c0_i32_1 = arith.constant 0 : i32
    return %c0_i32, %c0_i32_0 : i32, i32
  }
  func.func @transform_7(%arg0: i32) -> (i32, i32) {
    %c0_i32 = arith.constant 0 : i32
    %c0_i32_0 = arith.constant 0 : i32
    return %arg0, %c0_i32 : i32, i32
  }
}

</mosaic_0001>

<llo_original>
// kernel: tpu_custom_call.1
$region0: #{tpu_custom_call.1}
  #allocation0 [shape = 'u32[]', space=smem, size = 0x4, offset = 0x4, fixed_abs, tag = 'smem constant byte address 0x4 - core index']
  #allocation1 [shape = 'u32[144,128]{1,0:T(1,128)}', space=vmem, size = 0x12000, scoped, tag = 'internal scratch']
  %s0 = inlined_call_operand.hbm [shape: f32[8,32], index: 0, kind: input, shape index: {}]
  %s1 = inlined_call_operand.hbm [shape: f32[1,32], index: 1, kind: input, shape index: {}]
  %s2 = inlined_call_operand.hbm [shape: f32[1,32], index: 2, kind: input, shape index: {}]
  %s3 = inlined_call_operand.hbm [shape: f32[32,64], index: 3, kind: input, shape index: {}]
  %s4 = inlined_call_operand.hbm [shape: f32[1,64], index: 4, kind: input, shape index: {}]
  %s5 = inlined_call_operand.hbm [shape: f32[64,128], index: 5, kind: input, shape index: {}]
  %s6 = inlined_call_operand.hbm [shape: f32[1,128], index: 6, kind: input, shape index: {}]
  %s7 = inlined_call_operand.hbm [shape: f32[8,128], index: 7, kind: output, shape index: {}]
  %s8 = sld [smem:[#allocation0]]
  $region66: #{tpu_custom_call.1} parent=0
    _
  %s10 = ssub.s32 1, %s8
  %s11 = scalar_select 0, %s10, %s8
  $region1: #{tpu_custom_call.1} parent=0
    #allocation2 [shape = 'u8[4096]{0}', space=vmem, size = 0x1000, scoped, tag = 'input window, operand 0, single buffered']
    #allocation3 [shape = 's32[1]{0}', space=sflag, size = 0x4, scoped, tag = 'scoped memory for tpu_custom_call.1']
    #allocation4 [shape = 's32[1]{0}', space=sflag, size = 0x4, scoped, tag = 'scoped memory for tpu_custom_call.1']
    #allocation5 [shape = 'u8[512]{0}', space=vmem, size = 0x400, scoped, tag = 'input window, operand 1, single buffered']
    #allocation6 [shape = 's32[1]{0}', space=sflag, size = 0x4, scoped, tag = 'scoped memory for tpu_custom_call.1']
    #allocation7 [shape = 'u8[512]{0}', space=vmem, size = 0x400, scoped, tag = 'input window, operand 2, single buffered']
    #allocation8 [shape = 'u8[16384]{0}', space=vmem, size = 0x4000, scoped, tag = 'input window, operand 3, single buffered']
    #allocation9 [shape = 's32[1]{0}', space=sflag, size = 0x4, scoped, tag = 'scoped memory for tpu_custom_call.1']
    #allocation10 [shape = 'u8[512]{0}', space=vmem, size = 0x400, scoped, tag = 'input window, operand 4, single buffered']
    #allocation11 [shape = 'u8[32768]{0}', space=vmem, size = 0x8000, scoped, tag = 'input window, operand 5, single buffered']
    #allocation12 [shape = 's32[1]{0}', space=sflag, size = 0x4, scoped, tag = 'scoped memory for tpu_custom_call.1']
    #allocation13 [shape = 'u8[512]{0}', space=vmem, size = 0x400, scoped, tag = 'input window, operand 6, single buffered']
    #allocation14 [shape = 'u8[4096]{0}', space=vmem, size = 0x1000, scoped, tag = 'output window, operand 0, single buffered']
    %12 = vsyncpa [#allocation3], 0
    %13 = vsyncpa [#allocation6], 0
    %14 = vsyncpa [#allocation9], 0
    %15 = vsyncpa [#allocation12], 0
    %16 = vsyncpa [#allocation4], 0
    // Predicated region
    $region2: #{tpu_custom_call.1} parent=1 // pred_check
      _
    $region3: #{tpu_custom_call.1} parent=1 // pred_check_branch
      %18 = sbr.rel (0) target = $region5
    $region4: #{tpu_custom_call.1} parent=1 // pred_region
      %s20 = ssub.s32 128, 128
      %21 = vsyncadd [#allocation3], %s20
      %s23 = sshll.u32 [#allocation2], 4
      %s24 = int_to_ptr.vmem [resolvable:$true] %s23
      %26 = dma.hbm_to_vmem [thread:$0]  %s0, 128, %s24, [#allocation3]
    $region5: #{tpu_custom_call.1} parent=1 // pred_fallthru
      _
    // Predicated region
    $region6: #{tpu_custom_call.1} parent=1 // pred_check
      _
    $region7: #{tpu_custom_call.1} parent=1 // pred_check_branch
      %28 = sbr.rel (0) target = $region9
    $region8: #{tpu_custom_call.1} parent=1 // pred_region
      %s30 = ssub.s32 16, 16
      %31 = vsyncadd [#allocation6], %s30
      %s33 = sshll.u32 [#allocation5], 4
      %s34 = int_to_ptr.vmem [resolvable:$true] %s33
      %36 = dma.hbm_to_vmem [thread:$0]  %s1, 16, %s34, [#allocation6]
    $region9: #{tpu_custom_call.1} parent=1 // pred_fallthru
      _
    // Predicated region
    $region10: #{tpu_custom_call.1} parent=1 // pred_check
      _
    $region11: #{tpu_custom_call.1} parent=1 // pred_check_branch
      %38 = sbr.rel (0) target = $region13
    $region12: #{tpu_custom_call.1} parent=1 // pred_region
      %s40 = ssub.s32 16, 16
      %41 = vsyncadd [#allocation6], %s40
      %s43 = sshll.u32 [#allocation7], 4
      %s44 = int_to_ptr.vmem [resolvable:$true] %s43
      %46 = dma.hbm_to_vmem [thread:$0]  %s2, 16, %s44, [#allocation6]
    $region13: #{tpu_custom_call.1} parent=1 // pred_fallthru
      _
    // Predicated region
    $region14: #{tpu_custom_call.1} parent=1 // pred_check
      _
    $region15: #{tpu_custom_call.1} parent=1 // pred_check_branch
      %48 = sbr.rel (0) target = $region17
    $region16: #{tpu_custom_call.1} parent=1 // pred_region
      %s50 = ssub.s32 512, 512
      %51 = vsyncadd [#allocation9], %s50
      %s52 = sshll.u32 [#allocation8], 4
      %s53 = int_to_ptr.vmem [resolvable:$true] %s52
      %58 = dma.hbm_to_vmem [thread:$0]  %s3, 512, %s53, [#allocation9], 128, 128, 8
    $region17: #{tpu_custom_call.1} parent=1 // pred_fallthru
      _
    // Predicated region
    $region18: #{tpu_custom_call.1} parent=1 // pred_check
      _
    $region19: #{tpu_custom_call.1} parent=1 // pred_check_branch
      %60 = sbr.rel (0) target = $region21
    $region20: #{tpu_custom_call.1} parent=1 // pred_region
      %s62 = ssub.s32 16, 16
      %63 = vsyncadd [#allocation9], %s62
      %s65 = sshll.u32 [#allocation10], 4
      %s66 = int_to_ptr.vmem [resolvable:$true] %s65
      %68 = dma.hbm_to_vmem [thread:$0]  %s4, 16, %s66, [#allocation9]
    $region21: #{tpu_custom_call.1} parent=1 // pred_fallthru
      _
    // Predicated region
    $region22: #{tpu_custom_call.1} parent=1 // pred_check
      _
    $region23: #{tpu_custom_call.1} parent=1 // pred_check_branch
      %70 = sbr.rel (0) target = $region25
    $region24: #{tpu_custom_call.1} parent=1 // pred_region
      %s72 = ssub.s32 1024, 1024
      %73 = vsyncadd [#allocation12], %s72
      %s74 = sshll.u32 [#allocation11], 4
      %s75 = int_to_ptr.vmem [resolvable:$true] %s74
      %80 = dma.hbm_to_vmem [thread:$0]  %s5, 1024, %s75, [#allocation12], 128, 128, 8
    $region25: #{tpu_custom_call.1} parent=1 // pred_fallthru
      _
    // Predicated region
    $region26: #{tpu_custom_call.1} parent=1 // pred_check
      _
    $region27: #{tpu_custom_call.1} parent=1 // pred_check_branch
      %82 = sbr.rel (0) target = $region29
    $region28: #{tpu_custom_call.1} parent=1 // pred_region
      %s84 = ssub.s32 16, 16
      %85 = vsyncadd [#allocation12], %s84
      %s87 = sshll.u32 [#allocation13], 4
      %s88 = int_to_ptr.vmem [resolvable:$true] %s87
      %90 = dma.hbm_to_vmem [thread:$0]  %s6, 16, %s88, [#allocation12]
    $region29: #{tpu_custom_call.1} parent=1 // pred_fallthru
      _
    // Predicated region
    $region30: #{tpu_custom_call.1} parent=1 // pred_check
      _
    $region31: #{tpu_custom_call.1} parent=1 // pred_check_branch
      %92 = sbr.rel (0) target = $region33
    $region32: #{tpu_custom_call.1} parent=1 // pred_region
      %93 = dma.done [#allocation3], 128
    $region33: #{tpu_custom_call.1} parent=1 // pred_fallthru
      _
    // Predicated region
    $region34: #{tpu_custom_call.1} parent=1 // pred_check
      _
    $region35: #{tpu_custom_call.1} parent=1 // pred_check_branch
      %95 = sbr.rel (0) target = $region37
    $region36: #{tpu_custom_call.1} parent=1 // pred_region
      %96 = dma.done [#allocation6], 16
    $region37: #{tpu_custom_call.1} parent=1 // pred_fallthru
      _
    // Predicated region
    $region38: #{tpu_custom_call.1} parent=1 // pred_check
      _
    $region39: #{tpu_custom_call.1} parent=1 // pred_check_branch
      %98 = sbr.rel (0) target = $region41
    $region40: #{tpu_custom_call.1} parent=1 // pred_region
      %99 = dma.done [#allocation6], 16
    $region41: #{tpu_custom_call.1} parent=1 // pred_fallthru
      _
    // Predicated region
    $region42: #{tpu_custom_call.1} parent=1 // pred_check
      _
    $region43: #{tpu_custom_call.1} parent=1 // pred_check_branch
      %101 = sbr.rel (0) target = $region45
    $region44: #{tpu_custom_call.1} parent=1 // pred_region
      %102 = dma.done [#allocation9], 512
    $region45: #{tpu_custom_call.1} parent=1 // pred_fallthru
      _
    // Predicated region
    $region46: #{tpu_custom_call.1} parent=1 // pred_check
      _
    $region47: #{tpu_custom_call.1} parent=1 // pred_check_branch
      %104 = sbr.rel (0) target = $region49
    $region48: #{tpu_custom_call.1} parent=1 // pred_region
      %105 = dma.done [#allocation9], 16
    $region49: #{tpu_custom_call.1} parent=1 // pred_fallthru
      _
    // Predicated region
    $region50: #{tpu_custom_call.1} parent=1 // pred_check
      _
    $region51: #{tpu_custom_call.1} parent=1 // pred_check_branch
      %107 = sbr.rel (0) target = $region53
    $region52: #{tpu_custom_call.1} parent=1 // pred_region
      %108 = dma.done [#allocation12], 1024
    $region53: #{tpu_custom_call.1} parent=1 // pred_fallthru
      _
    // Predicated region
    $region54: #{tpu_custom_call.1} parent=1 // pred_check
      _
    $region55: #{tpu_custom_call.1} parent=1 // pred_check_branch
      %110 = sbr.rel (0) target = $region57
    $region56: #{tpu_custom_call.1} parent=1 // pred_region
      %111 = dma.done [#allocation12], 16
    $region57: #{tpu_custom_call.1} parent=1 // pred_fallthru
      _
    %v112 = vld [vmem:[#allocation2] sm:$0xff]
    %vm113 = vcmask 261120
    %v114 = vsel %vm113, %v112, 0.0
    %115 = vadd.xlane.f32.xlu0 %v114
    %v116 = vpop.xlane.xlu0 %115
    %v117 = vrcp.pop 32.0
    %v118 = vmul.f32 %v116, %v117
    %v119 = vsub.f32 %v112, %v118
    %v120 = vmul.f32 %v119, %v119
    %v121 = vsel %vm113, %v120, 0.0
    %122 = vadd.xlane.f32.xlu0 %v121
    %v123 = vpop.xlane.xlu0 %122
    %v124 = vmul.f32 %v123, %v117
    %v125 = vadd.f32 %v124, 1e-05
    %v126 = vrsqrt.pop %v125
    %v127 = vmul.f32 %v119, %v126
    %v128 = vld [vmem:[#allocation5] sm:$0x1]
    %v130 = vlaneseq
    %v131 = vshrl.u32 %v130, 7
    %v132 = vsub.s32 0, %v131
    %v133 = vrot.slane %v128, %v132
    %v135 = vmul.f32 %v127, %v133
    %v136 = vld [vmem:[#allocation7] sm:$0x1]
    %v138 = vlaneseq
    %v139 = vshrl.u32 %v138, 7
    %v140 = vsub.s32 0, %v139
    %v141 = vrot.slane %v136, %v140
    %v143 = vadd.f32 %v135, %v141
    %v144 = vld [vmem:[#allocation8] sm:$0xff]
    %v145 = vld [vmem:[#allocation8 + $0x8] sm:$0xff]
    %v146 = vld [vmem:[#allocation8 + $0x10] sm:$0xff]
    %v147 = vld [vmem:[#allocation8 + $0x18] sm:$0xff]
    %v148 = vld [vmem:[#allocation10] sm:$0x1]
    %v150 = vlaneseq
    %v151 = vshrl.u32 %v150, 7
    %v152 = vsub.s32 0, %v151
    %v153 = vrot.slane %v148, %v152
    %v156 = vsel %vm113, %v143, 0
    %158 = vmatprep.subr.mxu0 0.0
    %159 = vmatpush1.msra.mxu0 %v144
    %160 = vmatprep.subr.mxu0 0.0
    %161 = vmatpush1.msra.mxu0 %v145
    %162 = vmatprep.subr.mxu0 0.0
    %163 = vmatpush1.msra.mxu0 %v146
    %164 = vmatprep.subr.mxu0 0.0
    %165 = vmatpush1.msra.mxu0 %v147
    %166 = vmatprep.subr.mxu0 0.0
    %167 = vmatpush1.msra.mxu0 0.0
    %168 = vmatprep.subr.mxu0 0.0
    %169 = vmatpush1.msra.mxu0 0.0
    %170 = vmatprep.subr.mxu0 0.0
    %171 = vmatpush1.msra.mxu0 0.0
    %172 = vmatprep.subr.mxu0 0.0
    %173 = vmatpush1.msra.mxu0 0.0
    %174 = vmatprep.subr.mxu0 0.0
    %175 = vmatpush1.msra.mxu0 0.0
    %176 = vmatprep.subr.mxu0 0.0
    %177 = vmatpush1.msra.mxu0 0.0
    %178 = vmatprep.subr.mxu0 0.0
    %179 = vmatpush1.msra.mxu0 0.0
    %180 = vmatprep.subr.mxu0 0.0
    %181 = vmatpush1.msra.mxu0 0.0
    %182 = vmatprep.subr.mxu0 0.0
    %183 = vmatpush1.msra.mxu0 0.0
    %184 = vmatprep.subr.mxu0 0.0
    %185 = vmatpush1.msra.mxu0 0.0
    %186 = vmatprep.subr.mxu0 0.0
    %187 = vmatpush1.msra.mxu0 0.0
    %188 = vmatprep.subr.mxu0 0.0
    %189 = vmatpush1.msra.mxu0 0.0
    %190 = vmatprep.subr.mxu0 0.0
    %191 = vmatpush1.msra.mxu0 0.0
    %192 = vmatprep.subr.mxu0 0.0
    %193 = vmatpush1.msra.mxu0 0.0
    %194 = vmatprep.subr.mxu0 0.0
    %195 = vmatpush1.msra.mxu0 0.0
    %196 = vmatprep.subr.mxu0 0.0
    %197 = vmatpush1.msra.mxu0 0.0
    %198 = vmatprep.subr.mxu0 0.0
    %199 = vmatpush1.msra.mxu0 0.0
    %200 = vmatprep.subr.mxu0 0.0
    %201 = vmatpush1.msra.mxu0 0.0
    %202 = vmatprep.subr.mxu0 0.0
    %203 = vmatpush1.msra.mxu0 0.0
    %204 = vmatprep.subr.mxu0 0.0
    %205 = vmatpush1.msra.mxu0 0.0
    %206 = vmatprep.subr.mxu0 0.0
    %207 = vmatpush1.msra.mxu0 0.0
    %208 = vmatprep.subr.mxu0 0.0
    %209 = vmatpush1.msra.mxu0 0.0
    %210 = vmatprep.subr.mxu0 0.0
    %211 = vmatpush1.msra.mxu0 0.0
    %212 = vmatprep.subr.mxu0 0.0
    %213 = vmatpush1.msra.mxu0 0.0
    %214 = vmatprep.subr.mxu0 0.0
    %215 = vmatpush1.msra.mxu0 0.0
    %216 = vmatprep.subr.mxu0 0.0
    %217 = vmatpush1.msra.mxu0 0.0
    %218 = vmatprep.subr.mxu0 0.0
    %219 = vmatpush1.msra.mxu0 0.0
    %220 = vmatprep.subr.mxu0 0.0
    %221 = vmatpush1.msra.mxu0 0.0
    %222 = vmatprep.mubr.f32.mxu0 0.0
    %223 = vmatmul.mubr.f32.gmra.mrb[0].mxu0 %v156
    %v224 = vpop.f32.mrb[0].mxu0
    %v225 = vadd.f32 %v153, %v224
    %v226 = vpop.f32.mrb[0].mxu0
    %227 = vdwg.mxu0
    %v228 = vmax.f32 %v225, 0.0
    %v229 = vld [vmem:[#allocation11] sm:$0xff]
    %v230 = vld [vmem:[#allocation11 + $0x8] sm:$0xff]
    %v231 = vld [vmem:[#allocation11 + $0x10] sm:$0xff]
    %v232 = vld [vmem:[#allocation11 + $0x18] sm:$0xff]
    %v233 = vld [vmem:[#allocation11 + $0x20] sm:$0xff]
    %v234 = vld [vmem:[#allocation11 + $0x28] sm:$0xff]
    %v235 = vld [vmem:[#allocation11 + $0x30] sm:$0xff]
    %v236 = vld [vmem:[#allocation11 + $0x38] sm:$0xff]
    %v237 = vld [vmem:[#allocation13] sm:$0x1]
    %v239 = vlaneseq
    %v240 = vshrl.u32 %v239, 7
    %v241 = vsub.s32 0, %v240
    %v242 = vrot.slane %v237, %v241
    %vm244 = vcmask 523264
    %v246 = vsel %vm244, %v228, 0
    %248 = vmatprep.subr.mxu0 0.0
    %249 = vmatpush1.msra.mxu0 %v229
    %250 = vmatprep.subr.mxu0 0.0
    %251 = vmatpush1.msra.mxu0 %v230
    %252 = vmatprep.subr.mxu0 0.0
    %253 = vmatpush1.msra.mxu0 %v231
    %254 = vmatprep.subr.mxu0 0.0
    %255 = vmatpush1.msra.mxu0 %v232
    %256 = vmatprep.subr.mxu0 0.0
    %257 = vmatpush1.msra.mxu0 %v233
    %258 = vmatprep.subr.mxu0 0.0
    %259 = vmatpush1.msra.mxu0 %v234
    %260 = vmatprep.subr.mxu0 0.0
    %261 = vmatpush1.msra.mxu0 %v235
    %262 = vmatprep.subr.mxu0 0.0
    %263 = vmatpush1.msra.mxu0 %v236
    %264 = vmatprep.subr.mxu0 0.0
    %265 = vmatpush1.msra.mxu0 0.0
    %266 = vmatprep.subr.mxu0 0.0
    %267 = vmatpush1.msra.mxu0 0.0
    %268 = vmatprep.subr.mxu0 0.0
    %269 = vmatpush1.msra.mxu0 0.0
    %270 = vmatprep.subr.mxu0 0.0
    %271 = vmatpush1.msra.mxu0 0.0
    %272 = vmatprep.subr.mxu0 0.0
    %273 = vmatpush1.msra.mxu0 0.0
    %274 = vmatprep.subr.mxu0 0.0
    %275 = vmatpush1.msra.mxu0 0.0
    %276 = vmatprep.subr.mxu0 0.0
    %277 = vmatpush1.msra.mxu0 0.0
    %278 = vmatprep.subr.mxu0 0.0
    %279 = vmatpush1.msra.mxu0 0.0
    %280 = vmatprep.subr.mxu0 0.0
    %281 = vmatpush1.msra.mxu0 0.0
    %282 = vmatprep.subr.mxu0 0.0
    %283 = vmatpush1.msra.mxu0 0.0
    %284 = vmatprep.subr.mxu0 0.0
    %285 = vmatpush1.msra.mxu0 0.0
    %286 = vmatprep.subr.mxu0 0.0
    %287 = vmatpush1.msra.mxu0 0.0
    %288 = vmatprep.subr.mxu0 0.0
    %289 = vmatpush1.msra.mxu0 0.0
    %290 = vmatprep.subr.mxu0 0.0
    %291 = vmatpush1.msra.mxu0 0.0
    %292 = vmatprep.subr.mxu0 0.0
    %293 = vmatpush1.msra.mxu0 0.0
    %294 = vmatprep.subr.mxu0 0.0
    %295 = vmatpush1.msra.mxu0 0.0
    %296 = vmatprep.subr.mxu0 0.0
    %297 = vmatpush1.msra.mxu0 0.0
    %298 = vmatprep.subr.mxu0 0.0
    %299 = vmatpush1.msra.mxu0 0.0
    %300 = vmatprep.subr.mxu0 0.0
    %301 = vmatpush1.msra.mxu0 0.0
    %302 = vmatprep.subr.mxu0 0.0
    %303 = vmatpush1.msra.mxu0 0.0
    %304 = vmatprep.subr.mxu0 0.0
    %305 = vmatpush1.msra.mxu0 0.0
    %306 = vmatprep.subr.mxu0 0.0
    %307 = vmatpush1.msra.mxu0 0.0
    %308 = vmatprep.subr.mxu0 0.0
    %309 = vmatpush1.msra.mxu0 0.0
    %310 = vmatprep.subr.mxu0 0.0
    %311 = vmatpush1.msra.mxu0 0.0
    %312 = vmatprep.mubr.f32.mxu0 0.0
    %313 = vmatmul.mubr.f32.gmra.mrb[0].mxu0 %v246
    %v314 = vpop.f32.mrb[0].mxu0
    %v315 = vadd.f32 %v242, %v314
    %v316 = vpop.f32.mrb[0].mxu0
    %317 = vdwg.mxu0
    %318 = vst [vmem:[#allocation14] sm:$0xff] %v315
    // Predicated region
    $region58: #{tpu_custom_call.1} parent=1 // pred_check
      _
    $region59: #{tpu_custom_call.1} parent=1 // pred_check_branch
      %320 = sbr.rel (0) target = $region61
    $region60: #{tpu_custom_call.1} parent=1 // pred_region
      %s322 = ssub.s32 128, 128
      %323 = vsyncadd [#allocation4], %s322
      %s325 = sshll.u32 [#allocation14], 4
      %s326 = int_to_ptr.vmem [resolvable:$true] %s325
      %328 = dma.vmem_to_hbm [thread:$0]  %s326, 128, %s7, [#allocation4]
    $region61: #{tpu_custom_call.1} parent=1 // pred_fallthru
      _
    // Predicated region
    $region62: #{tpu_custom_call.1} parent=1 // pred_check
      _
    $region63: #{tpu_custom_call.1} parent=1 // pred_check_branch
      %330 = sbr.rel (0) target = $region65
    $region64: #{tpu_custom_call.1} parent=1 // pred_region
      %331 = dma.done [#allocation4], 128
    $region65: #{tpu_custom_call.1} parent=1 // pred_fallthru
      _
    %332 = vsyncpa [#allocation3], 1
    %333 = vsyncpa [#allocation6], 1
    %334 = vsyncpa [#allocation9], 1
    %335 = vsyncpa [#allocation12], 1
    %336 = vsyncpa [#allocation4], 1

</llo_original>
